<compile_context>
chip_gen: v5e
topology: v5e:2x2
jax: 0.10.0
libtpu: 0.0.40
codegen_flags: <defaults>
</compile_context>

<pallas_src>
import jax
import jax.numpy as jnp
import numpy as np
from jax import lax
from jax.experimental import pallas as pl
from jax.experimental.pallas import tpu as pltpu


def _round_up(a: int, b: int) -> int:
    return (a + b - 1) // b * b


def sentence_attention_kernel(starts_ref, ends_ref, x_ref, v_ref,
                              out_ref, att_ref):
    x = x_ref[...]                                   # (Np, Ep) f32
    v = v_ref[...]                                   # (1,  Ep) f32  (folded Wm/Wv)
    td, n_p = att_ref.shape                          # doc-tile size, padded N

    # Scores for every sentence, computed once per tile, lane-oriented: (1, Np).
    # Contraction over the last dim of both operands (rhs-transposed matmul).
    scores = lax.dot_general(v, x, (((1,), (1,)), ((), ())),
                             preferred_element_type=jnp.float32)      # (1, Np)

    # Per-document membership mask from [start, end) bounds.
    col = lax.broadcasted_iota(jnp.int32, (td, n_p), 1)               # (TD, Np)
    starts = starts_ref[...]                                          # (TD, 1)
    ends = ends_ref[...]                                              # (TD, 1)
    in_bag = (col >= starts) & (col < ends)                           # (TD, Np)

    # Masked softmax over each document's sentences (rows of zeros for padded
    # sentences / padded-empty documents, never NaN).
    s_b = jnp.broadcast_to(scores, (td, n_p))
    neg_inf = jnp.full((td, n_p), -jnp.inf, jnp.float32)
    masked = jnp.where(in_bag, s_b, neg_inf)
    m = jnp.max(masked, axis=1, keepdims=True)                        # (TD, 1)
    e = jnp.where(in_bag, jnp.exp(masked - m), jnp.zeros((td, n_p), jnp.float32))
    denom = jnp.sum(e, axis=1, keepdims=True)                         # (TD, 1)
    inv = pl.reciprocal(jnp.maximum(denom, jnp.float32(1e-30)), approx=True)
    w = e * inv                                                       # (TD, Np)

    # All weighted bag sums for this doc tile as one MXU matmul.
    out_ref[...] = jnp.dot(w, x, preferred_element_type=jnp.float32
                           ).astype(out_ref.dtype)                    # (TD, Ep)
    att_ref[...] = w.astype(att_ref.dtype)                            # (TD, Np)


def sentence_attention(x, wm, wv, doc_bounds):
    """x: (N, E) f32, wm: (E, E) relationMatrix.weight, wv: (1, E)
    relationVector.weight, doc_bounds: (D, 2) int32 [start, end) pairs.

    Returns (out_concat (D, E), att (D, N)); att[d, n] is the softmax weight of
    sentence n inside document d (zero for sentences outside the document)."""
    N, E = x.shape
    D = doc_bounds.shape[0]

    # Exact algebraic fold of the two bias-free linear layers.
    v_row = (wv @ wm).astype(jnp.float32)            # (1, E)

    # Pad to vreg / MXU friendly shapes (lane-dense outputs: last dims x128).
    TD = max(8, min(256, _round_up(D, 8)))           # docs per grid step
    n_p = _round_up(max(N, 128), 128)
    e_p = _round_up(max(E, 128), 128)
    d_p = _round_up(max(D, TD), TD)

    x_p = jnp.zeros((n_p, e_p), jnp.float32).at[:N, :E].set(x.astype(jnp.float32))
    v_p = jnp.zeros((1, e_p), jnp.float32).at[:, :E].set(v_row)
    starts = jnp.zeros((d_p, 1), jnp.int32).at[:D, 0].set(doc_bounds[:, 0])
    ends = jnp.zeros((d_p, 1), jnp.int32).at[:D, 0].set(doc_bounds[:, 1])
    # Padded documents have start == end == 0 -> empty -> all-zero rows.

    grid = (d_p // TD,)
    out_p, att_p = pl.pallas_call(
        sentence_attention_kernel,
        out_shape=(jax.ShapeDtypeStruct((d_p, e_p), jnp.float32),
                   jax.ShapeDtypeStruct((d_p, n_p), jnp.float32)),
        grid=grid,
        in_specs=[
            pl.BlockSpec((TD, 1), lambda t: (t, 0)),     # starts
            pl.BlockSpec((TD, 1), lambda t: (t, 0)),     # ends
            pl.BlockSpec((n_p, e_p), lambda t: (0, 0)),  # x (resident across tiles)
            pl.BlockSpec((1, e_p), lambda t: (0, 0)),    # folded score vector
        ],
        out_specs=(
            pl.BlockSpec((TD, e_p), lambda t: (t, 0)),   # document vectors
            pl.BlockSpec((TD, n_p), lambda t: (t, 0)),   # per-doc softmax weights
        ),
        compiler_params=pltpu.CompilerParams(
            dimension_semantics=("parallel",)),
    )(starts, ends, x_p, v_p)

    return out_p[:D, :E], att_p[:D, :N]


def sentence_attention_reference(x, wm, wv, document_index):
    """Pure-JAX reference matching the PyTorch forward exactly."""
    outs = []
    keep = None
    for (s, e) in document_index:
        bag = x[s:e]
        scores = (bag @ wm.T) @ wv.T                 # (b, 1)
        sm = jax.nn.softmax(scores.reshape(-1)).reshape(-1, 1)
        keep = sm
        outs.append(jnp.sum(sm * bag, axis=0))
    return jnp.stack(outs), keep


if __name__ == "__main__":
    # Small shapes consistent with the module: N sentences, embedding_size E,
    # D documents defined by (start, end) index pairs.
    E = 32           # embedding_size
    N = 10           # total number of sentences
    document_index = [(0, 4), (4, 7), (7, 10)]
    D = len(document_index)

    key = jax.random.PRNGKey(0)
    kx, km, kv = jax.random.split(key, 3)

    x = jax.random.normal(kx, (N, E), dtype=jnp.float32)
    # Deterministic Linear-like init: U(-1/sqrt(E), 1/sqrt(E))
    bound = 1.0 / np.sqrt(E)
    wm = jax.random.uniform(km, (E, E), jnp.float32, -bound, bound)  # relationMatrix.weight
    wv = jax.random.uniform(kv, (1, E), jnp.float32, -bound, bound)  # relationVector.weight

    doc_bounds = jnp.asarray(document_index, dtype=jnp.int32)        # (D, 2)

    out_concat, att_all = sentence_attention(x, wm, wv, doc_bounds)
    out_concat = jax.block_until_ready(out_concat)
    att_all = jax.block_until_ready(att_all)

    # keep_attention = softmax weights of the LAST document, shape (b_last, 1)
    s_last, e_last = document_index[-1]
    keep_attention = att_all[-1, s_last:e_last].reshape(-1, 1)

    # Validate against the pure-JAX reference.  Tolerance is relaxed slightly
    # (2e-3) because the kernel uses the EUP approximate reciprocal for the
    # softmax normalization; errors from any wiring bug would be >> 1e-2.
    ref_out, ref_keep = sentence_attention_reference(x, wm, wv, document_index)
    assert out_concat.shape == (D, E)
    assert keep_attention.shape == (e_last - s_last, 1)
    np.testing.assert_allclose(np.asarray(out_concat), np.asarray(ref_out),
                               rtol=2e-3, atol=2e-3)
    np.testing.assert_allclose(np.asarray(keep_attention), np.asarray(ref_keep),
                               rtol=2e-3, atol=2e-3)

    print("KERNEL_OK")
</pallas_src>

<mosaic_0001>
module attributes {stable_mosaic.version = 11 : i64} {
  func.func @sentence_attention_kernel(%arg0: i32, %arg1: memref<8x1xi32, #tpu.memory_space<vmem>>, %arg2: memref<8x1xi32, #tpu.memory_space<vmem>>, %arg3: memref<128x128xf32, #tpu.memory_space<vmem>>, %arg4: memref<1x128xf32, #tpu.memory_space<vmem>>, %arg5: memref<8x128xf32, #tpu.memory_space<vmem>>, %arg6: memref<8x128xf32, #tpu.memory_space<vmem>>) attributes {dimension_semantics = [#tpu.dimension_semantics<parallel>], iteration_bounds = array<i64: 1>, scalar_prefetch = 0 : i64, scratch_operands = 0 : i64, tpu.core_type = #tpu.core_type<tc>, window_params = [{transform_indices = @transform_0, window_bounds = array<i64: 8, 1>}, {transform_indices = @transform_1, window_bounds = array<i64: 8, 1>}, {pipeline_mode = #tpu.pipeline_mode<synchronous>, transform_indices = @transform_2, window_bounds = array<i64: 128, 128>}, {pipeline_mode = #tpu.pipeline_mode<synchronous>, transform_indices = @transform_3, window_bounds = array<i64: 1, 128>}, {transform_indices = @transform_4, window_bounds = array<i64: 8, 128>}, {transform_indices = @transform_5, window_bounds = array<i64: 8, 128>}]} {
    %c0 = arith.constant 0 : index
    %c0_0 = arith.constant 0 : index
    %0 = vector.load %arg3[%c0, %c0_0] : memref<128x128xf32, #tpu.memory_space<vmem>>, vector<128x128xf32>
    %c0_1 = arith.constant 0 : index
    %c0_2 = arith.constant 0 : index
    %1 = vector.load %arg4[%c0_1, %c0_2] : memref<1x128xf32, #tpu.memory_space<vmem>>, vector<1x128xf32>
    %cst = arith.constant dense<0.000000e+00> : vector<1x128xf32>
    %2 = tpu.matmul %1, %0, %cst {dimension_numbers = #tpu.dot_dimension_numbers<[1], [1], [0], [0], [0, 0, 1, 0], [], []>} : vector<1x128xf32>, vector<128x128xf32>, vector<1x128xf32> -> vector<1x128xf32>
    %3 = tpu.iota {dimensions = array<i32: 1>} : vector<8x128xi32>
    %c0_3 = arith.constant 0 : index
    %c0_4 = arith.constant 0 : index
    %4 = vector.load %arg1[%c0_3, %c0_4] : memref<8x1xi32, #tpu.memory_space<vmem>>, vector<8x1xi32>
    %c0_5 = arith.constant 0 : index
    %c0_6 = arith.constant 0 : index
    %5 = vector.load %arg2[%c0_5, %c0_6] : memref<8x1xi32, #tpu.memory_space<vmem>>, vector<8x1xi32>
    %6 = vector.broadcast %4 : vector<8x1xi32> to vector<8x128xi32>
    %7 = arith.cmpi sge, %3, %6 : vector<8x128xi32>
    %8 = vector.broadcast %5 : vector<8x1xi32> to vector<8x128xi32>
    %9 = arith.cmpi slt, %3, %8 : vector<8x128xi32>
    %10 = arith.andi %7, %9 : vector<8x128xi1>
    %11 = vector.shape_cast %2 : vector<1x128xf32> to vector<1x128xf32>
    %12 = vector.broadcast %11 : vector<1x128xf32> to vector<8x128xf32>
    %cst_7 = arith.constant 0xFF800000 : f32
    %13 = vector.broadcast %cst_7 : f32 to vector<8x128xf32>
    %14 = arith.select %10, %12, %13 : vector<8x128xi1>, vector<8x128xf32>
    %cst_8 = arith.constant dense<0xFF800000> : vector<8xf32>
    %15 = vector.multi_reduction <maximumf>, %14, %cst_8 [1] : vector<8x128xf32> to vector<8xf32>
    %16 = vector.shape_cast %15 : vector<8xf32> to vector<8x1xf32>
    %17 = vector.broadcast %16 : vector<8x1xf32> to vector<8x128xf32>
    %18 = arith.subf %14, %17 : vector<8x128xf32>
    %19 = math.exp %18 : vector<8x128xf32>
    %cst_9 = arith.constant 0.000000e+00 : f32
    %20 = vector.broadcast %cst_9 : f32 to vector<8x128xf32>
    %21 = arith.select %10, %19, %20 : vector<8x128xi1>, vector<8x128xf32>
    %cst_10 = arith.constant dense<0.000000e+00> : vector<8xf32>
    %22 = vector.multi_reduction <add>, %21, %cst_10 [1] : vector<8x128xf32> to vector<8xf32>
    %23 = vector.shape_cast %22 : vector<8xf32> to vector<8x1xf32>
    %cst_11 = arith.constant 1.000000e-30 : f32
    %24 = vector.broadcast %cst_11 : f32 to vector<8x1xf32>
    %25 = arith.maximumf %23, %24 : vector<8x1xf32>
    %26 = tpu.reciprocal %25 {approx = true} : vector<8x1xf32> -> vector<8x1xf32>
    %27 = vector.broadcast %26 : vector<8x1xf32> to vector<8x128xf32>
    %28 = arith.mulf %21, %27 : vector<8x128xf32>
    %cst_12 = arith.constant dense<0.000000e+00> : vector<8x128xf32>
    %29 = tpu.matmul %28, %0, %cst_12 {dimension_numbers = #tpu.dot_dimension_numbers<[1], [0], [0], [1], [0, 0, 1, 1], [], []>} : vector<8x128xf32>, vector<128x128xf32>, vector<8x128xf32> -> vector<8x128xf32>
    %c0_13 = arith.constant 0 : index
    %c0_14 = arith.constant 0 : index
    %30 = vector.load %arg5[%c0_13, %c0_14] : memref<8x128xf32, #tpu.memory_space<vmem>>, vector<8x128xf32>
    tpu.vector_store %arg5[%c0_13, %c0_14], %29 {strides = array<i32>} : memref<8x128xf32, #tpu.memory_space<vmem>>, vector<8x128xf32>,
    %c0_15 = arith.constant 0 : index
    %c0_16 = arith.constant 0 : index
    %31 = vector.load %arg6[%c0_15, %c0_16] : memref<8x128xf32, #tpu.memory_space<vmem>>, vector<8x128xf32>
    tpu.vector_store %arg6[%c0_15, %c0_16], %28 {strides = array<i32>} : memref<8x128xf32, #tpu.memory_space<vmem>>, vector<8x128xf32>,
    return
  }
  func.func @transform_0(%arg0: i32) -> (i32, i32) {
    %c0_i32 = arith.constant 0 : i32
    %c0_i32_0 = arith.constant 0 : i32
    return %arg0, %c0_i32 : i32, i32
  }
  func.func @transform_1(%arg0: i32) -> (i32, i32) {
    %c0_i32 = arith.constant 0 : i32
    %c0_i32_0 = arith.constant 0 : i32
    return %arg0, %c0_i32 : i32, i32
  }
  func.func @transform_2(%arg0: i32) -> (i32, i32) {
    %c0_i32 = arith.constant 0 : i32
    %c0_i32_0 = arith.constant 0 : i32
    %c0_i32_1 = arith.constant 0 : i32
    return %c0_i32, %c0_i32_0 : i32, i32
  }
  func.func @transform_3(%arg0: i32) -> (i32, i32) {
    %c0_i32 = arith.constant 0 : i32
    %c0_i32_0 = arith.constant 0 : i32
    %c0_i32_1 = arith.constant 0 : i32
    return %c0_i32, %c0_i32_0 : i32, i32
  }
  func.func @transform_4(%arg0: i32) -> (i32, i32) {
    %c0_i32 = arith.constant 0 : i32
    %c0_i32_0 = arith.constant 0 : i32
    return %arg0, %c0_i32 : i32, i32
  }
  func.func @transform_5(%arg0: i32) -> (i32, i32) {
    %c0_i32 = arith.constant 0 : i32
    %c0_i32_0 = arith.constant 0 : i32
    return %arg0, %c0_i32 : i32, i32
  }
}

</mosaic_0001>

<llo_original>
// kernel: tpu_custom_call.1
$region0: #{tpu_custom_call.1}
  #allocation0 [shape = 'u32[]', space=smem, size = 0x4, offset = 0x4, fixed_abs, tag = 'smem constant byte address 0x4 - core index']
  #allocation1 [shape = 'u32[72,128]{1,0:T(1,128)}', space=vmem, size = 0x9000, scoped, tag = 'internal scratch']
  %s0 = inlined_call_operand.vmem [shape: s32[8,1], index: 0, kind: input, shape index: {}]
  %s1 = inlined_call_operand.vmem [shape: s32[8,1], index: 1, kind: input, shape index: {}]
  %s2 = inlined_call_operand.hbm [shape: f32[128,128], index: 2, kind: input, shape index: {}]
  %s3 = inlined_call_operand.vmem [shape: f32[1,128], index: 3, kind: input, shape index: {}]
  %s4 = inlined_call_operand.hbm [shape: f32[8,128], index: 4, kind: output, shape index: {0}]
  %s5 = inlined_call_operand.hbm [shape: f32[8,128], index: 5, kind: output, shape index: {1}]
  %6 = xla_tuple %s4, %s5
  %s7 = sld [smem:[#allocation0]]
  $region38: #{tpu_custom_call.1} parent=0
    _
  %s9 = ssub.s32 1, %s7
  %s10 = scalar_select 0, %s9, %s7
  $region1: #{tpu_custom_call.1} parent=0
    #allocation2 [shape = 'u8[65536]{0}', space=vmem, size = 0x10000, scoped, tag = 'input window, operand 2, single buffered']
    #allocation3 [shape = 's32[1]{0}', space=sflag, size = 0x4, scoped, tag = 'scoped memory for tpu_custom_call.1']
    #allocation4 [shape = 's32[1]{0}', space=sflag, size = 0x4, scoped, tag = 'scoped memory for tpu_custom_call.1']
    #allocation5 [shape = 'u8[4096]{0}', space=vmem, size = 0x1000, scoped, tag = 'output window, operand 0, single buffered']
    #allocation6 [shape = 'u8[4096]{0}', space=vmem, size = 0x1000, scoped, tag = 'output window, operand 1, single buffered']
    #allocation7 [shape = 's32[1]{0}', space=sflag, size = 0x4, scoped, tag = 'scoped memory for tpu_custom_call.1']
    %11 = vsyncpa [#allocation3], 0
    %12 = vsyncpa [#allocation4], 0
    %13 = vsyncpa [#allocation7], 0
    // Predicated region
    $region2: #{tpu_custom_call.1} parent=1 // pred_check
      _
    $region3: #{tpu_custom_call.1} parent=1 // pred_check_branch
      %15 = sbr.rel (0) target = $region5
    $region4: #{tpu_custom_call.1} parent=1 // pred_region
      _
    $region5: #{tpu_custom_call.1} parent=1 // pred_fallthru
      _
    // Predicated region
    $region6: #{tpu_custom_call.1} parent=1 // pred_check
      _
    $region7: #{tpu_custom_call.1} parent=1 // pred_check_branch
      %17 = sbr.rel (0) target = $region9
    $region8: #{tpu_custom_call.1} parent=1 // pred_region
      _
    $region9: #{tpu_custom_call.1} parent=1 // pred_fallthru
      _
    // Predicated region
    $region10: #{tpu_custom_call.1} parent=1 // pred_check
      _
    $region11: #{tpu_custom_call.1} parent=1 // pred_check_branch
      %19 = sbr.rel (0) target = $region13
    $region12: #{tpu_custom_call.1} parent=1 // pred_region
      %21 = vsyncadd [#allocation3], 0
      %s22 = sshll.u32 %s2, 4
      %s23 = int_to_ptr.hbm [resolvable:$true] %s22
      %s24 = sshll.u32 [#allocation2], 4
      %s25 = int_to_ptr.vmem [resolvable:$true] %s24
      %30 = dma.hbm_to_vmem [thread:$0]  %s23, 2048, %s25, [#allocation3], 128, 128, 8
    $region13: #{tpu_custom_call.1} parent=1 // pred_fallthru
      _
    // Predicated region
    $region14: #{tpu_custom_call.1} parent=1 // pred_check
      _
    $region15: #{tpu_custom_call.1} parent=1 // pred_check_branch
      %32 = sbr.rel (0) target = $region17
    $region16: #{tpu_custom_call.1} parent=1 // pred_region
      _
    $region17: #{tpu_custom_call.1} parent=1 // pred_fallthru
      _
    // Predicated region
    $region18: #{tpu_custom_call.1} parent=1 // pred_check
      _
    $region19: #{tpu_custom_call.1} parent=1 // pred_check_branch
      %34 = sbr.rel (0) target = $region21
    $region20: #{tpu_custom_call.1} parent=1 // pred_region
      %36 = dma.done [#allocation3], 2048
    $region21: #{tpu_custom_call.1} parent=1 // pred_fallthru
      _
    %v37 = vld [vmem:[#allocation2] sm:$0xff]
    %v38 = vld [vmem:[#allocation2 + $0x8] sm:$0xff]
    %v39 = vld [vmem:[#allocation2 + $0x10] sm:$0xff]
    %v40 = vld [vmem:[#allocation2 + $0x18] sm:$0xff]
    %v41 = vld [vmem:[#allocation2 + $0x20] sm:$0xff]
    %v42 = vld [vmem:[#allocation2 + $0x28] sm:$0xff]
    %v43 = vld [vmem:[#allocation2 + $0x30] sm:$0xff]
    %v44 = vld [vmem:[#allocation2 + $0x38] sm:$0xff]
    %v45 = vld [vmem:[#allocation2 + $0x40] sm:$0xff]
    %v46 = vld [vmem:[#allocation2 + $0x48] sm:$0xff]
    %v47 = vld [vmem:[#allocation2 + $0x50] sm:$0xff]
    %v48 = vld [vmem:[#allocation2 + $0x58] sm:$0xff]
    %v49 = vld [vmem:[#allocation2 + $0x60] sm:$0xff]
    %v50 = vld [vmem:[#allocation2 + $0x68] sm:$0xff]
    %v51 = vld [vmem:[#allocation2 + $0x70] sm:$0xff]
    %v52 = vld [vmem:[#allocation2 + $0x78] sm:$0xff]
    %v53 = vld [vmem:[%s3] sm:$0x1]
    %54 = vmatpush.xpose.msra.mxu0 %v52
    %55 = vmatpush.xpose.msra.mxu0 %v51
    %56 = vmatpush.xpose.msra.mxu0 %v50
    %57 = vmatpush.xpose.msra.mxu0 %v49
    %58 = vmatpush.xpose.msra.mxu0 %v48
    %59 = vmatpush.xpose.msra.mxu0 %v47
    %60 = vmatpush.xpose.msra.mxu0 %v46
    %61 = vmatpush.xpose.msra.mxu0 %v45
    %62 = vmatpush.xpose.msra.mxu0 %v44
    %63 = vmatpush.xpose.msra.mxu0 %v43
    %64 = vmatpush.xpose.msra.mxu0 %v42
    %65 = vmatpush.xpose.msra.mxu0 %v41
    %66 = vmatpush.xpose.msra.mxu0 %v40
    %67 = vmatpush.xpose.msra.mxu0 %v39
    %68 = vmatpush.xpose.msra.mxu0 %v38
    %69 = vmatpush.xpose.msra.mxu0 %v37
    %70 = vmatmul.f32.gmra.mxu0 %v53
    %v71 = vpop.f32.mrf.mxu0
    %v72 = vadd.f32 0.0, %v71
    %73 = vdwg.mxu0
    %v74 = vlaneseq
    %v75 = vand.u32 %v74, 127
    %v76 = vld [vmem:[%s0] sm:$0xff]
    %v77 = vld [vmem:[%s1] sm:$0xff]
    %78 = vset.pattern.permute.xlu0 0
    %79 = vperm.xlu0 %78, %v76
    %v80 = vpop.permute.xlu0 %79
    %vm81 = vcmp.ge.s32.totalorder %v75, %v80
    %82 = vset.pattern.permute.xlu0 0
    %83 = vperm.xlu0 %82, %v77
    %v84 = vpop.permute.xlu0 %83
    %vm85 = vcmp.lt.s32.totalorder %v75, %v84
    %vm86 = vmand %vm81, %vm85
    %v87 = vperm.slane %v72, 0
    %v88 = vsel %vm86, %v87, -inf
    %89 = vmax.xlane.f32.xlu0 %v88
    %v90 = vpop.xlane.xlu0 %89
    %v91 = vsub.f32 %v88, %v90
    %v92 = vmul.f32 %v91, 1.442695
    %v93 = vpow.pop %v92
    %v94 = vsel %vm86, %v93, 0.0
    %95 = vadd.xlane.f32.xlu0 %v94
    %v96 = vpop.xlane.xlu0 %95
    %v97 = vmax.f32 %v96, 1e-30
    %v98 = vrcp.pop %v97
    %v99 = vmul.f32 %v94, %v98
    %100 = vmatpush.msra.mxu0 %v52
    %101 = vmatpush.msra.mxu0 %v51
    %102 = vmatpush.msra.mxu0 %v50
    %103 = vmatpush.msra.mxu0 %v49
    %104 = vmatpush.msra.mxu0 %v48
    %105 = vmatpush.msra.mxu0 %v47
    %106 = vmatpush.msra.mxu0 %v46
    %107 = vmatpush.msra.mxu0 %v45
    %108 = vmatpush.msra.mxu0 %v44
    %109 = vmatpush.msra.mxu0 %v43
    %110 = vmatpush.msra.mxu0 %v42
    %111 = vmatpush.msra.mxu0 %v41
    %112 = vmatpush.msra.mxu0 %v40
    %113 = vmatpush.msra.mxu0 %v39
    %114 = vmatpush.msra.mxu0 %v38
    %115 = vmatpush.msra.mxu0 %v37
    %116 = vmatmul.f32.gmra.mxu0 %v99
    %v117 = vpop.f32.mrf.mxu0
    %v118 = vadd.f32 0.0, %v117
    %119 = vdwg.mxu0
    %120 = vst [vmem:[#allocation5] sm:$0xff] %v118
    %121 = vst [vmem:[#allocation6] sm:$0xff] %v99
    // Predicated region
    $region22: #{tpu_custom_call.1} parent=1 // pred_check
      _
    $region23: #{tpu_custom_call.1} parent=1 // pred_check_branch
      %123 = sbr.rel (0) target = $region25
    $region24: #{tpu_custom_call.1} parent=1 // pred_region
      %125 = vsyncadd [#allocation4], 0
      %s127 = sshll.u32 [#allocation5], 4
      %s128 = int_to_ptr.vmem [resolvable:$true] %s127
      %s129 = sshll.u32 %s4, 4
      %s130 = int_to_ptr.hbm [resolvable:$true] %s129
      %132 = dma.vmem_to_hbm [thread:$0]  %s128, 128, %s130, [#allocation4]
    $region25: #{tpu_custom_call.1} parent=1 // pred_fallthru
      _
    // Predicated region
    $region26: #{tpu_custom_call.1} parent=1 // pred_check
      _
    $region27: #{tpu_custom_call.1} parent=1 // pred_check_branch
      %134 = sbr.rel (0) target = $region29
    $region28: #{tpu_custom_call.1} parent=1 // pred_region
      %136 = vsyncadd [#allocation7], 0
      %s138 = sshll.u32 [#allocation6], 4
      %s139 = int_to_ptr.vmem [resolvable:$true] %s138
      %s140 = sshll.u32 %s5, 4
      %s141 = int_to_ptr.hbm [resolvable:$true] %s140
      %143 = dma.vmem_to_hbm [thread:$0]  %s139, 128, %s141, [#allocation7]
    $region29: #{tpu_custom_call.1} parent=1 // pred_fallthru
      _
    // Predicated region
    $region30: #{tpu_custom_call.1} parent=1 // pred_check
      _
    $region31: #{tpu_custom_call.1} parent=1 // pred_check_branch
      %145 = sbr.rel (0) target = $region33
    $region32: #{tpu_custom_call.1} parent=1 // pred_region
      %147 = dma.done [#allocation4], 128
    $region33: #{tpu_custom_call.1} parent=1 // pred_fallthru
      _
    // Predicated region
    $region34: #{tpu_custom_call.1} parent=1 // pred_check
      _
    $region35: #{tpu_custom_call.1} parent=1 // pred_check_branch
      %149 = sbr.rel (0) target = $region37
    $region36: #{tpu_custom_call.1} parent=1 // pred_region
      %151 = dma.done [#allocation7], 128
    $region37: #{tpu_custom_call.1} parent=1 // pred_fallthru
      _
    %152 = vsyncpa [#allocation3], 1
    %153 = vsyncpa [#allocation4], 1
    %154 = vsyncpa [#allocation7], 1

</llo_original>
